<compile_context>
chip_gen: v7x
topology: tpu7x:2x2x1
jax: 0.10.0
libtpu: 0.0.40
codegen_flags: <defaults>
</compile_context>

<pallas_src>
import jax
import jax.numpy as jnp
from jax.experimental import pallas as pl
from jax.experimental.pallas import tpu as pltpu


# ----------------------------- helpers --------------------------------------


def _cdiv(a, b):
    return (a + b - 1) // b


def _round_up(x, m):
    return _cdiv(x, m) * m


def _sublane_multiple(dtype):
    # Minimum second-minor tile: 8 rows for f32, 16 for bf16, 32 for int8/fp8.
    return max(8, 32 // jnp.dtype(dtype).itemsize)


def _balanced_tile(dim, max_tile, align=128):
    """Tile size t (multiple of `align`, <= ~max_tile) and padded extent t * n,
    with n = ceil(dim_aligned / max_tile).  Bounds both step count and padding
    waste (< align per tile)."""
    dim_al = _round_up(dim, align)
    n = _cdiv(dim_al, max_tile)
    t = _round_up(_cdiv(dim_al, n), align)
    return t, t * n, n


# ----------------------------- kernels ---------------------------------------


def _dense_kernel_single_k(x_ref, w_ref, b_ref, o_ref):
    # Whole K in one tile: no accumulator round-trip, bias fused in epilogue.
    acc = jnp.dot(x_ref[...], w_ref[...], preferred_element_type=jnp.float32)
    o_ref[...] = (acc + b_ref[...].astype(jnp.float32)).astype(o_ref.dtype)


def _dense_kernel_multi_k(x_ref, w_ref, b_ref, o_ref, acc_ref):
    # K MUST stay the last (minor, "arbitrary") grid axis: the output block
    # index is K-invariant and o_ref is only written in the k==last epilogue.
    k = pl.program_id(2)

    @pl.when(k == 0)
    def _():
        # Initialize the accumulator with the broadcast bias (saves the
        # epilogue add and the zeros fill).
        acc_ref[...] = jnp.broadcast_to(
            b_ref[...].astype(jnp.float32), acc_ref.shape
        )

    acc_ref[...] += jnp.dot(
        x_ref[...], w_ref[...], preferred_element_type=jnp.float32
    )

    @pl.when(k == pl.num_programs(2) - 1)
    def _():
        o_ref[...] = acc_ref[...].astype(o_ref.dtype)


# ----------------------------- parameter prep --------------------------------


def prepare_dense_params(weight, bias, *, compute_dtype=None, max_tk=None,
                         max_tn=256):
    """One-time preparation (call at parameter-init time, NOT per forward):

    - transpose nn.Linear weight (out_dim, in_dim) -> (in_dim, out_dim),
    - zero-pad K/N to tile multiples (skipped if already aligned),
    - cast to the MXU compute dtype (e.g. bf16),
    - keep bias padded in f32 (added in the f32 accumulator).
    """
    out_dim, in_dim = weight.shape
    if compute_dtype is None:
        compute_dtype = weight.dtype
    compute_dtype = jnp.dtype(compute_dtype)
    if max_tk is None:
        # bf16 halves bytes per tile -> afford a deeper K tile.
        max_tk = 1024 if compute_dtype.itemsize <= 2 else 512

    tk, Kp, _ = _balanced_tile(in_dim, max_tk)
    tn, Np, _ = _balanced_tile(out_dim, max_tn)

    wt = weight.T  # (in_dim, out_dim)
    if wt.shape != (Kp, Np):
        wt = jnp.pad(wt, ((0, Kp - in_dim), (0, Np - out_dim)))
    wt = wt.astype(compute_dtype)

    b = bias.astype(jnp.float32)
    if Np != out_dim:
        b = jnp.pad(b, (0, Np - out_dim))
    b = b.reshape(1, Np)

    return dict(wt=wt, b=b, in_dim=in_dim, out_dim=out_dim,
                Kp=Kp, Np=Np, tk=tk, tn=tn, compute_dtype=compute_dtype)


# ----------------------------- forward ---------------------------------------


def dense_forward(x, params, *, max_tm=512):
    """Pallas equivalent of Dense.forward: (x @ W^T + b)[..., None, None]."""
    in_dim, out_dim = params["in_dim"], params["out_dim"]
    assert x.shape[-1] == in_dim
    leading = x.shape[:-1]
    x2 = x.reshape(-1, in_dim)
    B = x2.shape[0]
    out_dtype = x.dtype
    cdt = params["compute_dtype"]
    Kp, Np, tk, tn = params["Kp"], params["Np"], params["tk"], params["tn"]

    # dtype-aware sublane rounding for the batch (M) axis.
    sub = _sublane_multiple(cdt)
    tm, Mp, grid_m = _balanced_tile(B, max_tm, align=sub)
    grid_n, grid_k = Np // tn, Kp // tk

    # v7x megacore: guarantee >= 2 parallel (M/N) tiles when possible so both
    # TensorCores get work.  256-aligned half tiles still feed the MXU.
    if grid_m * grid_n == 1 and tn >= 256:
        tn //= 2
        grid_n = Np // tn

    # Pad / cast activations only when needed (zero K-padding contributes 0).
    xp = x2
    if xp.shape != (Mp, Kp):
        xp = jnp.pad(xp, ((0, Mp - B), (0, Kp - in_dim)))
    if xp.dtype != cdt:
        xp = xp.astype(cdt)

    in_sz = cdt.itemsize
    out_sz = jnp.dtype(out_dtype).itemsize

    # Deeper pipelining on W in the weight-streaming regime (multi-K).
    n_w_tiles = grid_m * grid_n * grid_k
    w_buffers = 3 if (grid_k > 1 and n_w_tiles >= 3) else 2

    cost = pl.CostEstimate(
        flops=2 * Mp * Np * Kp,
        transcendentals=0,
        bytes_accessed=(Mp * Kp * in_sz) * grid_n
        + (Kp * Np * in_sz) * grid_m
        + Mp * Np * out_sz
        + Np * 4,
    )

    # Explicit VMEM budget: double-buffered x/out, w_buffers-deep W, f32 acc.
    vmem_est = (2 * tm * tk * in_sz + w_buffers * tk * tn * in_sz
                + 2 * tn * 4 + 2 * tm * tn * out_sz + tm * tn * 4)
    vmem_limit = int(min(48 << 20, max(32 << 20, 2 * vmem_est)))

    if grid_k == 1:
        # Fast path: whole K resident, no accumulator, 2-D parallel grid.
        grid = (grid_m, grid_n)
        in_specs = [
            pl.BlockSpec((tm, tk), lambda i, j: (i, 0)),
            pl.BlockSpec((tk, tn), lambda i, j: (0, j)),
            pl.BlockSpec((1, tn), lambda i, j: (0, j)),
        ]
        out_spec = pl.BlockSpec((tm, tn), lambda i, j: (i, j))
        kernel = _dense_kernel_single_k
        scratch = []
        dims = ("parallel", "parallel")
    else:
        grid = (grid_m, grid_n, grid_k)  # K last: serial reduction axis.
        if w_buffers > 2:
            w_spec = pl.BlockSpec((tk, tn), lambda i, j, k: (k, j),
                                  pipeline_mode=pl.Buffered(w_buffers))
        else:
            w_spec = pl.BlockSpec((tk, tn), lambda i, j, k: (k, j))
        in_specs = [
            pl.BlockSpec((tm, tk), lambda i, j, k: (i, k)),
            w_spec,
            pl.BlockSpec((1, tn), lambda i, j, k: (0, j)),
        ]
        out_spec = pl.BlockSpec((tm, tn), lambda i, j, k: (i, j))
        kernel = _dense_kernel_multi_k
        scratch = [pltpu.VMEM((tm, tn), jnp.float32)]
        dims = ("parallel", "parallel", "arbitrary")

    y = pl.pallas_call(
        kernel,
        out_shape=jax.ShapeDtypeStruct((Mp, Np), out_dtype),
        grid_spec=pltpu.PrefetchScalarGridSpec(
            num_scalar_prefetch=0,
            grid=grid,
            in_specs=in_specs,
            out_specs=out_spec,
            scratch_shapes=scratch,
        ),
        compiler_params=pltpu.CompilerParams(
            dimension_semantics=dims,
            vmem_limit_bytes=vmem_limit,
        ),
        cost_estimate=cost,
    )(xp, params["wt"], params["b"])

    # Strip padding, then PyTorch's trailing [..., None, None] reshape (glue).
    y = y[:B, :out_dim]
    return y.reshape(*leading, out_dim, 1, 1)


def dense_apply(x, weight, bias, *, compute_dtype=None):
    """Convenience wrapper matching Dense.forward (params prepared per call;
    prefer prepare_dense_params once + dense_forward in a real model)."""
    params = prepare_dense_params(weight, bias, compute_dtype=compute_dtype)
    return dense_forward(x, params)


# ----------------------------- self-checks ------------------------------------


if __name__ == "__main__":
    key = jax.random.PRNGKey(0)
    kx, kw, kb = jax.random.split(key, 3)

    # --- 1) small demo shape (matches the module's intended use), f32 -------
    batch, input_dim, output_dim = 2, 32, 16
    bound = 1.0 / (input_dim ** 0.5)
    x = jax.random.normal(kx, (batch, input_dim), dtype=jnp.float32)
    weight = jax.random.uniform(kw, (output_dim, input_dim),
                                minval=-bound, maxval=bound, dtype=jnp.float32)
    bias = jax.random.uniform(kb, (output_dim,),
                              minval=-bound, maxval=bound, dtype=jnp.float32)

    params = prepare_dense_params(weight, bias)          # one-time prep
    out = jax.block_until_ready(dense_forward(x, params))
    ref = (x @ weight.T + bias)[..., None, None]
    assert out.shape == (batch, output_dim, 1, 1)
    assert jnp.allclose(out, ref, atol=1e-5, rtol=1e-5)

    # --- 2) larger f32 shape: multi-N grid, single-K fast path, padding -----
    kx2, kw2, kb2 = jax.random.split(jax.random.PRNGKey(1), 3)
    B2, in2, out2_dim = 256, 512, 384
    bound2 = 1.0 / (in2 ** 0.5)
    x2 = jax.random.normal(kx2, (B2, in2), dtype=jnp.float32)
    w2 = jax.random.uniform(kw2, (out2_dim, in2),
                            minval=-bound2, maxval=bound2, dtype=jnp.float32)
    b2 = jax.random.uniform(kb2, (out2_dim,),
                            minval=-bound2, maxval=bound2, dtype=jnp.float32)

    params2 = prepare_dense_params(w2, b2)
    out2 = jax.block_until_ready(dense_forward(x2, params2))
    ref2 = (x2 @ w2.T + b2)[..., None, None]
    assert out2.shape == (B2, out2_dim, 1, 1)
    assert jnp.allclose(out2, ref2, atol=1e-3, rtol=1e-3)

    # --- 3) bf16 compute path: K reduction + 3-deep W buffering -------------
    kx3, kw3, kb3 = jax.random.split(jax.random.PRNGKey(2), 3)
    B3, in3, out3_dim = 64, 2048, 512
    bound3 = 1.0 / (in3 ** 0.5)
    x3 = jax.random.normal(kx3, (B3, in3), dtype=jnp.float32)
    w3 = jax.random.uniform(kw3, (out3_dim, in3),
                            minval=-bound3, maxval=bound3, dtype=jnp.float32)
    b3 = jax.random.uniform(kb3, (out3_dim,),
                            minval=-bound3, maxval=bound3, dtype=jnp.float32)

    params3 = prepare_dense_params(w3, b3, compute_dtype=jnp.bfloat16)
    out3 = jax.block_until_ready(dense_forward(x3, params3))
    ref3 = (x3 @ w3.T + b3)[..., None, None]
    assert out3.shape == (B3, out3_dim, 1, 1)
    assert jnp.allclose(out3, ref3, atol=2e-2, rtol=2e-2)

    print("KERNEL_OK")
</pallas_src>

<mosaic_0001>
module attributes {stable_mosaic.version = 11 : i64} {
  func.func @_dense_kernel_single_k(%arg0: i32, %arg1: i32, %arg2: memref<8x128xf32, #tpu.memory_space<vmem>>, %arg3: memref<128x128xf32, #tpu.memory_space<vmem>>, %arg4: memref<1x128xf32, #tpu.memory_space<vmem>>, %arg5: memref<8x128xf32, #tpu.memory_space<vmem>>) attributes {dimension_semantics = [#tpu.dimension_semantics<parallel>, #tpu.dimension_semantics<parallel>], iteration_bounds = array<i64: 1, 1>, scalar_prefetch = 0 : i64, scratch_operands = 0 : i64, tpu.core_type = #tpu.core_type<tc>, window_params = [{transform_indices = @transform_0, window_bounds = array<i64: 8, 128>}, {transform_indices = @transform_1, window_bounds = array<i64: 128, 128>}, {transform_indices = @transform_2, window_bounds = array<i64: 1, 128>}, {transform_indices = @transform_3, window_bounds = array<i64: 8, 128>}]} {
    %c0 = arith.constant 0 : index
    %c0_0 = arith.constant 0 : index
    %0 = vector.load %arg2[%c0, %c0_0] : memref<8x128xf32, #tpu.memory_space<vmem>>, vector<8x128xf32>
    %c0_1 = arith.constant 0 : index
    %c0_2 = arith.constant 0 : index
    %1 = vector.load %arg3[%c0_1, %c0_2] : memref<128x128xf32, #tpu.memory_space<vmem>>, vector<128x128xf32>
    %cst = arith.constant dense<0.000000e+00> : vector<8x128xf32>
    %2 = tpu.matmul %0, %1, %cst {dimension_numbers = #tpu.dot_dimension_numbers<[1], [0], [0], [1], [0, 0, 1, 1], [], []>} : vector<8x128xf32>, vector<128x128xf32>, vector<8x128xf32> -> vector<8x128xf32>
    %c0_3 = arith.constant 0 : index
    %c0_4 = arith.constant 0 : index
    %3 = vector.load %arg4[%c0_3, %c0_4] : memref<1x128xf32, #tpu.memory_space<vmem>>, vector<1x128xf32>
    %4 = vector.broadcast %3 : vector<1x128xf32> to vector<8x128xf32>
    %5 = arith.addf %2, %4 : vector<8x128xf32>
    %c0_5 = arith.constant 0 : index
    %c0_6 = arith.constant 0 : index
    %6 = vector.load %arg5[%c0_5, %c0_6] : memref<8x128xf32, #tpu.memory_space<vmem>>, vector<8x128xf32>
    tpu.vector_store %arg5[%c0_5, %c0_6], %5 {strides = array<i32>} : memref<8x128xf32, #tpu.memory_space<vmem>>, vector<8x128xf32>,
    return
  }
  func.func @transform_0(%arg0: i32, %arg1: i32) -> (i32, i32) {
    %c0_i32 = arith.constant 0 : i32
    %c0_i32_0 = arith.constant 0 : i32
    return %arg0, %c0_i32 : i32, i32
  }
  func.func @transform_1(%arg0: i32, %arg1: i32) -> (i32, i32) {
    %c0_i32 = arith.constant 0 : i32
    %c0_i32_0 = arith.constant 0 : i32
    return %c0_i32, %arg1 : i32, i32
  }
  func.func @transform_2(%arg0: i32, %arg1: i32) -> (i32, i32) {
    %c0_i32 = arith.constant 0 : i32
    %c0_i32_0 = arith.constant 0 : i32
    return %c0_i32, %arg1 : i32, i32
  }
  func.func @transform_3(%arg0: i32, %arg1: i32) -> (i32, i32) {
    %c0_i32 = arith.constant 0 : i32
    return %arg0, %arg1 : i32, i32
  }
}

</mosaic_0001>

<llo_original>
// kernel: tpu_custom_call.1
$region0: #{tpu_custom_call.1}
  #allocation0 [shape = 'u32[]', space=smem, size = 0x4, offset = 0x4, fixed_abs, tag = 'smem constant byte address 0x4 - core index']
  #allocation1 [shape = 'u32[144,128]{1,0:T(1,128)}', space=vmem, size = 0x12000, scoped, tag = 'internal scratch']
  %s0 = inlined_call_operand.hbm [shape: f32[8,128], index: 0, kind: input, shape index: {}]
  %s1 = inlined_call_operand.hbm [shape: f32[128,128], index: 1, kind: input, shape index: {}]
  %s2 = inlined_call_operand.vmem [shape: f32[1,128], index: 2, kind: input, shape index: {}]
  %s3 = inlined_call_operand.hbm [shape: f32[8,128], index: 3, kind: output, shape index: {}]
  %s4 = sld [smem:[#allocation0]]
  $region30: #{tpu_custom_call.1} parent=0
    _
  %s6 = ssub.s32 1, %s4
  %s7 = scalar_select 0, %s6, %s4
  $region1: #{tpu_custom_call.1} parent=0
    #allocation2 [shape = 'u8[4096]{0}', space=vmem, size = 0x1000, scoped, tag = 'input window, operand 0, single buffered']
    #allocation3 [shape = 's32[1]{0}', space=sflag, size = 0x4, scoped, tag = 'scoped memory for tpu_custom_call.1']
    #allocation4 [shape = 's32[1]{0}', space=sflag, size = 0x4, scoped, tag = 'scoped memory for tpu_custom_call.1']
    #allocation5 [shape = 'u8[65536]{0}', space=vmem, size = 0x10000, scoped, tag = 'input window, operand 1, single buffered']
    #allocation6 [shape = 's32[1]{0}', space=sflag, size = 0x4, scoped, tag = 'scoped memory for tpu_custom_call.1']
    #allocation7 [shape = 'u8[4096]{0}', space=vmem, size = 0x1000, scoped, tag = 'output window, operand 0, single buffered']
    %8 = vsyncpa [#allocation3], 0
    %9 = vsyncpa [#allocation6], 0
    %10 = vsyncpa [#allocation4], 0
    // Predicated region
    $region2: #{tpu_custom_call.1} parent=1 // pred_check
      _
    $region3: #{tpu_custom_call.1} parent=1 // pred_check_branch
      %12 = sbr.rel (0) target = $region5
    $region4: #{tpu_custom_call.1} parent=1 // pred_region
      %s14 = ssub.s32 128, 128
      %15 = vsyncadd [#allocation3], %s14
      %s17 = sshll.u32 [#allocation2], 4
      %s18 = int_to_ptr.vmem [resolvable:$true] %s17
      %20 = dma.hbm_to_vmem [thread:$0]  %s0, 128, %s18, [#allocation3]
    $region5: #{tpu_custom_call.1} parent=1 // pred_fallthru
      _
    // Predicated region
    $region6: #{tpu_custom_call.1} parent=1 // pred_check
      _
    $region7: #{tpu_custom_call.1} parent=1 // pred_check_branch
      %22 = sbr.rel (0) target = $region9
    $region8: #{tpu_custom_call.1} parent=1 // pred_region
      %s24 = ssub.s32 2048, 2048
      %25 = vsyncadd [#allocation6], %s24
      %s26 = sshll.u32 [#allocation5], 4
      %s27 = int_to_ptr.vmem [resolvable:$true] %s26
      %32 = dma.hbm_to_vmem [thread:$0]  %s1, 2048, %s27, [#allocation6], 128, 128, 8
    $region9: #{tpu_custom_call.1} parent=1 // pred_fallthru
      _
    // Predicated region
    $region10: #{tpu_custom_call.1} parent=1 // pred_check
      _
    $region11: #{tpu_custom_call.1} parent=1 // pred_check_branch
      %34 = sbr.rel (0) target = $region13
    $region12: #{tpu_custom_call.1} parent=1 // pred_region
      _
    $region13: #{tpu_custom_call.1} parent=1 // pred_fallthru
      _
    // Predicated region
    $region14: #{tpu_custom_call.1} parent=1 // pred_check
      _
    $region15: #{tpu_custom_call.1} parent=1 // pred_check_branch
      %36 = sbr.rel (0) target = $region17
    $region16: #{tpu_custom_call.1} parent=1 // pred_region
      %37 = dma.done [#allocation3], 128
    $region17: #{tpu_custom_call.1} parent=1 // pred_fallthru
      _
    // Predicated region
    $region18: #{tpu_custom_call.1} parent=1 // pred_check
      _
    $region19: #{tpu_custom_call.1} parent=1 // pred_check_branch
      %39 = sbr.rel (0) target = $region21
    $region20: #{tpu_custom_call.1} parent=1 // pred_region
      %40 = dma.done [#allocation6], 2048
    $region21: #{tpu_custom_call.1} parent=1 // pred_fallthru
      _
    %v41 = vld [vmem:[#allocation2] sm:$0xff]
    %v42 = vld [vmem:[#allocation5] sm:$0xff]
    %v43 = vld [vmem:[#allocation5 + $0x8] sm:$0xff]
    %v44 = vld [vmem:[#allocation5 + $0x10] sm:$0xff]
    %v45 = vld [vmem:[#allocation5 + $0x18] sm:$0xff]
    %v46 = vld [vmem:[#allocation5 + $0x20] sm:$0xff]
    %v47 = vld [vmem:[#allocation5 + $0x28] sm:$0xff]
    %v48 = vld [vmem:[#allocation5 + $0x30] sm:$0xff]
    %v49 = vld [vmem:[#allocation5 + $0x38] sm:$0xff]
    %v50 = vld [vmem:[#allocation5 + $0x40] sm:$0xff]
    %v51 = vld [vmem:[#allocation5 + $0x48] sm:$0xff]
    %v52 = vld [vmem:[#allocation5 + $0x50] sm:$0xff]
    %v53 = vld [vmem:[#allocation5 + $0x58] sm:$0xff]
    %v54 = vld [vmem:[#allocation5 + $0x60] sm:$0xff]
    %v55 = vld [vmem:[#allocation5 + $0x68] sm:$0xff]
    %v56 = vld [vmem:[#allocation5 + $0x70] sm:$0xff]
    %v57 = vld [vmem:[#allocation5 + $0x78] sm:$0xff]
    %v58 = vld [vmem:[%s2] sm:$0x1]
    %v60 = vlaneseq
    %v61 = vshrl.u32 %v60, 7
    %v62 = vsub.s32 0, %v61
    %v63 = vrot.slane %v58, %v62
    %65 = vmatprep.subr.mxu0 0.0
    %66 = vmatpush1.msra.mxu0 %v42
    %67 = vmatprep.subr.mxu0 0.0
    %68 = vmatpush1.msra.mxu0 %v43
    %69 = vmatprep.subr.mxu0 0.0
    %70 = vmatpush1.msra.mxu0 %v44
    %71 = vmatprep.subr.mxu0 0.0
    %72 = vmatpush1.msra.mxu0 %v45
    %73 = vmatprep.subr.mxu0 0.0
    %74 = vmatpush1.msra.mxu0 %v46
    %75 = vmatprep.subr.mxu0 0.0
    %76 = vmatpush1.msra.mxu0 %v47
    %77 = vmatprep.subr.mxu0 0.0
    %78 = vmatpush1.msra.mxu0 %v48
    %79 = vmatprep.subr.mxu0 0.0
    %80 = vmatpush1.msra.mxu0 %v49
    %81 = vmatprep.subr.mxu0 0.0
    %82 = vmatpush1.msra.mxu0 %v50
    %83 = vmatprep.subr.mxu0 0.0
    %84 = vmatpush1.msra.mxu0 %v51
    %85 = vmatprep.subr.mxu0 0.0
    %86 = vmatpush1.msra.mxu0 %v52
    %87 = vmatprep.subr.mxu0 0.0
    %88 = vmatpush1.msra.mxu0 %v53
    %89 = vmatprep.subr.mxu0 0.0
    %90 = vmatpush1.msra.mxu0 %v54
    %91 = vmatprep.subr.mxu0 0.0
    %92 = vmatpush1.msra.mxu0 %v55
    %93 = vmatprep.subr.mxu0 0.0
    %94 = vmatpush1.msra.mxu0 %v56
    %95 = vmatprep.subr.mxu0 0.0
    %96 = vmatpush1.msra.mxu0 %v57
    %97 = vmatprep.subr.mxu0 0.0
    %98 = vmatpush1.msra.mxu0 0.0
    %99 = vmatprep.subr.mxu0 0.0
    %100 = vmatpush1.msra.mxu0 0.0
    %101 = vmatprep.subr.mxu0 0.0
    %102 = vmatpush1.msra.mxu0 0.0
    %103 = vmatprep.subr.mxu0 0.0
    %104 = vmatpush1.msra.mxu0 0.0
    %105 = vmatprep.subr.mxu0 0.0
    %106 = vmatpush1.msra.mxu0 0.0
    %107 = vmatprep.subr.mxu0 0.0
    %108 = vmatpush1.msra.mxu0 0.0
    %109 = vmatprep.subr.mxu0 0.0
    %110 = vmatpush1.msra.mxu0 0.0
    %111 = vmatprep.subr.mxu0 0.0
    %112 = vmatpush1.msra.mxu0 0.0
    %113 = vmatprep.subr.mxu0 0.0
    %114 = vmatpush1.msra.mxu0 0.0
    %115 = vmatprep.subr.mxu0 0.0
    %116 = vmatpush1.msra.mxu0 0.0
    %117 = vmatprep.subr.mxu0 0.0
    %118 = vmatpush1.msra.mxu0 0.0
    %119 = vmatprep.subr.mxu0 0.0
    %120 = vmatpush1.msra.mxu0 0.0
    %121 = vmatprep.subr.mxu0 0.0
    %122 = vmatpush1.msra.mxu0 0.0
    %123 = vmatprep.subr.mxu0 0.0
    %124 = vmatpush1.msra.mxu0 0.0
    %125 = vmatprep.subr.mxu0 0.0
    %126 = vmatpush1.msra.mxu0 0.0
    %127 = vmatprep.subr.mxu0 0.0
    %128 = vmatpush1.msra.mxu0 0.0
    %129 = vmatprep.mubr.f32.mxu0 0.0
    %130 = vmatmul.mubr.f32.gmra.mrb[0].mxu0 %v41
    %v131 = vpop.f32.mrb[0].mxu0
    %v132 = vadd.f32 %v63, %v131
    %v133 = vpop.f32.mrb[0].mxu0
    %134 = vdwg.mxu0
    %135 = vst [vmem:[#allocation7] sm:$0xff] %v132
    // Predicated region
    $region22: #{tpu_custom_call.1} parent=1 // pred_check
      _
    $region23: #{tpu_custom_call.1} parent=1 // pred_check_branch
      %137 = sbr.rel (0) target = $region25
    $region24: #{tpu_custom_call.1} parent=1 // pred_region
      %s139 = ssub.s32 128, 128
      %140 = vsyncadd [#allocation4], %s139
      %s142 = sshll.u32 [#allocation7], 4
      %s143 = int_to_ptr.vmem [resolvable:$true] %s142
      %145 = dma.vmem_to_hbm [thread:$0]  %s143, 128, %s3, [#allocation4]
    $region25: #{tpu_custom_call.1} parent=1 // pred_fallthru
      _
    // Predicated region
    $region26: #{tpu_custom_call.1} parent=1 // pred_check
      _
    $region27: #{tpu_custom_call.1} parent=1 // pred_check_branch
      %147 = sbr.rel (0) target = $region29
    $region28: #{tpu_custom_call.1} parent=1 // pred_region
      %148 = dma.done [#allocation4], 128
    $region29: #{tpu_custom_call.1} parent=1 // pred_fallthru
      _
    %149 = vsyncpa [#allocation3], 1
    %150 = vsyncpa [#allocation6], 1
    %151 = vsyncpa [#allocation4], 1

</llo_original>
